<compile_context>
chip_gen: v7x
topology: tpu7x:2x2x1
jax: 0.10.0
libtpu: 0.0.40
codegen_flags: <defaults>
</compile_context>

<pallas_src>
import functools
import math

import jax
import jax.numpy as jnp
from jax import lax
from jax.experimental import pallas as pl
from jax.experimental.pallas import tpu as pltpu


def _round_up(v, m):
    return (v + m - 1) // m * m


def _vmem_capacity_bytes():
    try:
        info = pltpu.get_tpu_info()
        cap = getattr(info, "vmem_capacity_bytes", None)
        if cap:
            return int(cap)
    except Exception:
        pass
    return 64 * 1024 * 1024            # conservative default (v7x per-core VMEM)


def _pick_tile_f(d_model, d_ff, vmem_bytes):
    # bf16 w1-slab + w2-slab, double-buffered ~ 8 * d_model * tile_f bytes.
    # Keep them under ~1/4 of physical VMEM so activations/output fit too.
    target = max(256, (vmem_bytes // 4) // (8 * d_model))
    tf = d_ff
    while tf > target and tf % 2 == 0:
        tf //= 2
    return tf


def _pick_tile_t(T, candidates):
    for cand in candidates:
        if T % cand == 0:
            return cand
    return T


# --------------------------------------------------------------------------
# Kernel 1: fused FP32 gate + softmax + top-2 selection (lane-dense output)
# --------------------------------------------------------------------------
def _gate_router_kernel(x_ref, wg_ref, out_ref):
    n_exp = wg_ref.shape[-1]
    x = x_ref[...]                                                   # (tt, d) f32
    # FP32LinearGate: keep the gate matmul in fp32 (matches the module).
    logits = jnp.dot(x, wg_ref[...], preferred_element_type=jnp.float32)

    m = jnp.max(logits, axis=-1, keepdims=True)
    z = jnp.exp(logits - m)                                          # unnormalized softmax
    s = jnp.sum(z, axis=-1, keepdims=True)

    col = jax.lax.broadcasted_iota(jnp.int32, z.shape, 1)
    colf = col.astype(jnp.float32)

    # top-1 (first-occurrence tie-break, same as argmax)
    zmax1 = jnp.max(z, axis=-1, keepdims=True)
    e1f = jnp.min(jnp.where(z >= zmax1, colf, float(n_exp)), axis=-1, keepdims=True)
    p1 = zmax1 / s

    # top-2: zero out the top-1 column and repeat
    z2 = jnp.where(col == e1f.astype(jnp.int32), 0.0, z)
    zmax2 = jnp.max(z2, axis=-1, keepdims=True)
    e2f = jnp.min(jnp.where(z2 >= zmax2, colf, float(n_exp)), axis=-1, keepdims=True)
    p2 = zmax2 / s

    # pack (e1, e2, p1, p2) into one lane-dense 128-wide slab (unmasked stores)
    lane = jax.lax.broadcasted_iota(jnp.int32, (x.shape[0], 128), 1)
    packed = (jnp.where(lane == 0, e1f, 0.0) + jnp.where(lane == 1, e2f, 0.0)
              + jnp.where(lane == 2, p1, 0.0) + jnp.where(lane == 3, p2, 0.0))
    out_ref[...] = packed


def gate_and_route(xt, w_gate):
    """[T, d] fp32 -> (e1, e2) int32 [T] and (p1, p2) fp32 [T]."""
    T, d = xt.shape
    n_exp = w_gate.shape[-1]
    tile_t = _pick_tile_t(T, (2048, 1024, 512, 256, 128))
    assert T % tile_t == 0 and tile_t % 8 == 0

    packed = pl.pallas_call(
        _gate_router_kernel,
        out_shape=jax.ShapeDtypeStruct((T, 128), jnp.float32),
        grid=(T // tile_t,),
        in_specs=[
            pl.BlockSpec((tile_t, d), lambda i: (i, 0)),
            pl.BlockSpec((d, n_exp), lambda i: (0, 0)),
        ],
        out_specs=pl.BlockSpec((tile_t, 128), lambda i: (i, 0)),
        compiler_params=pltpu.CompilerParams(
            dimension_semantics=("parallel",)),
    )(xt, w_gate)

    e1 = packed[:, 0].astype(jnp.int32)
    e2 = packed[:, 1].astype(jnp.int32)
    return e1, e2, packed[:, 2], packed[:, 3]


# --------------------------------------------------------------------------
# Routing bookkeeping (tiny O(T*E) integer glue, plain XLA)
# --------------------------------------------------------------------------
def build_dispatch_tables(e1, e2, p1, p2, num_experts, capacity, c_pad):
    # TODO(synk): could be folded into kernel 1 as a sequential SMEM carry.
    T = e1.shape[0]
    mask1 = jax.nn.one_hot(e1, num_experts, dtype=jnp.float32)       # [T, E]
    mask2 = jax.nn.one_hot(e2, num_experts, dtype=jnp.float32)

    loc1 = jnp.cumsum(mask1, axis=0) - 1.0
    loc2 = jnp.cumsum(mask2, axis=0) - 1.0 + jnp.sum(mask1, axis=0, keepdims=True)

    keep1 = jnp.sum(mask1 * (loc1 < capacity), axis=-1)              # [T] in {0,1}
    keep2 = jnp.sum(mask2 * (loc2 < capacity), axis=-1)
    pos1 = jnp.sum(loc1 * mask1, axis=-1).astype(jnp.int32)
    pos2 = jnp.sum(loc2 * mask2, axis=-1).astype(jnp.int32)

    g1 = p1 * keep1
    g2 = p2 * keep2
    denom = jnp.maximum(g1 + g2, 1e-9)
    w1n = g1 / denom
    w2n = g2 / denom

    toks = jnp.arange(T, dtype=jnp.int32)
    # dropped tokens go to an overflow column that is sliced off; one fused scatter.
    slot1 = jnp.where(keep1 > 0, pos1, c_pad).astype(jnp.int32)
    slot2 = jnp.where(keep2 > 0, pos2, c_pad).astype(jnp.int32)
    tok_table = jnp.zeros((num_experts, c_pad + 1), jnp.int32)
    tok_table = tok_table.at[
        jnp.concatenate([e1, e2]), jnp.concatenate([slot1, slot2])
    ].set(jnp.concatenate([toks, toks]))[:, :c_pad]

    # token-major combine metadata: flat row index into Y[E*c_pad, d] for each
    # of the 2 assignments (dropped -> row 0 with weight 0), plus lane-padded
    # per-token combine weights.
    flat1 = jnp.where(keep1 > 0, e1 * c_pad + pos1, 0).astype(jnp.int32)
    flat2 = jnp.where(keep2 > 0, e2 * c_pad + pos2, 0).astype(jnp.int32)
    flat_idx = jnp.stack([flat1, flat2], axis=-1).reshape(-1)        # [2T] interleaved
    w_pad = jnp.zeros((T, 128), jnp.float32).at[:, 0].set(w1n).at[:, 1].set(w2n)
    return tok_table, flat_idx, w_pad


# --------------------------------------------------------------------------
# Kernel 2: DMA-gather dispatch + per-expert FFN (expert-major output)
# grid = (E, d_ff // tile_f); expert axis parallel, d_ff axis accumulates.
# --------------------------------------------------------------------------
def _expert_ffn_kernel(tok_ref,                               # SMEM: [E*c_pad] int32
                       x_hbm,                                 # HBM:  [T, d] f32
                       w1_ref, b1_ref, w2_ref, b2_ref,
                       y_ref,                                 # out: (1, c_pad, d) f32
                       xg_sc, xd_sc, sem,
                       *, c_pad):
    e = pl.program_id(0)
    t = pl.program_id(1)

    @pl.when(t == 0)
    def _dispatch():
        # sparse dispatch: async DMA-gather this expert's c_pad token rows from
        # HBM; the copies run on the copy engines and overlap each other.
        # TODO(synk): for very large capacities, chunk the issue/drain loops to
        #             bound outstanding DMAs, and double-buffer across experts.
        def _issue(c, carry):
            tok = tok_ref[e * c_pad + c]
            pltpu.make_async_copy(x_hbm.at[tok], xg_sc.at[c], sem.at[0]).start()
            return carry
        lax.fori_loop(0, c_pad, _issue, 0)

        def _drain(c, carry):
            pltpu.make_async_copy(x_hbm.at[0], xg_sc.at[0], sem.at[0]).wait()
            return carry
        lax.fori_loop(0, c_pad, _drain, 0)

        # cast gathered rows to bf16 once per expert (not once per d_ff slab)
        xd_sc[...] = xg_sc[...].astype(jnp.bfloat16)
        # expert-major output block is VMEM-resident across the d_ff axis:
        # initialize it with the "behind" bias and accumulate slab products.
        y_ref[...] = jnp.broadcast_to(b2_ref[...], y_ref.shape)

    # front linear slab -> gelu -> behind linear slab, accumulated in fp32
    h = jnp.dot(xd_sc[...], w1_ref[0], preferred_element_type=jnp.float32)
    h = jax.nn.gelu(h + b1_ref[0])
    y_ref[...] += jnp.dot(h.astype(jnp.bfloat16), w2_ref[0],
                          preferred_element_type=jnp.float32)[None, :, :]


def moe_expert_ffn(tok_table, xt, w1, b1, w2, b2):
    """Sparse dispatch + per-expert FFN.  Returns Y [E, c_pad, d] fp32."""
    T, d = xt.shape
    n_exp, _, d_ff = w1.shape
    c_pad = tok_table.shape[-1]

    vmem_bytes = _vmem_capacity_bytes()
    tile_f = _pick_tile_f(d, d_ff, vmem_bytes)                 # generation-aware slab
    n_tf = d_ff // tile_f
    vmem_limit = min(vmem_bytes * 3 // 4, 96 * 1024 * 1024)    # 96MiB v5e/v6e, 48MiB v7x

    tok_flat = tok_table.reshape(-1)
    kernel = functools.partial(_expert_ffn_kernel, c_pad=c_pad)

    cost = pl.CostEstimate(
        flops=4 * n_exp * c_pad * d * d_ff,
        transcendentals=n_exp * c_pad * d_ff,
        bytes_accessed=(2 * n_exp * c_pad * d * 4 + 4 * n_exp * d * d_ff
                        + n_exp * (d_ff + d) * 4))

    grid_spec = pltpu.PrefetchScalarGridSpec(
        num_scalar_prefetch=1,
        grid=(n_exp, n_tf),
        in_specs=[
            pl.BlockSpec(memory_space=pl.ANY),                        # x stays in HBM
            pl.BlockSpec((1, d, tile_f), lambda e, t, tok: (e, 0, t)),
            pl.BlockSpec((1, 1, tile_f), lambda e, t, tok: (e, 0, t)),
            pl.BlockSpec((1, tile_f, d), lambda e, t, tok: (e, t, 0)),
            pl.BlockSpec((1, 1, d), lambda e, t, tok: (e, 0, 0)),
        ],
        out_specs=pl.BlockSpec((1, c_pad, d), lambda e, t, tok: (e, 0, 0)),
        scratch_shapes=[
            pltpu.VMEM((c_pad, d), jnp.float32),       # DMA gather destination
            pltpu.VMEM((c_pad, d), jnp.bfloat16),      # bf16 MXU operand (cast once)
            pltpu.SemaphoreType.DMA((1,)),
        ],
    )
    return pl.pallas_call(
        kernel,
        out_shape=jax.ShapeDtypeStruct((n_exp, c_pad, d), jnp.float32),
        grid_spec=grid_spec,
        compiler_params=pltpu.CompilerParams(
            # expert-major output blocks are independent -> expert axis is
            # parallel (2 TCs on v7x); d_ff axis accumulates into the resident
            # output block so it stays sequential.
            dimension_semantics=("parallel", "arbitrary"),
            vmem_limit_bytes=vmem_limit),
        cost_estimate=cost,
    )(tok_flat, xt, w1, b1, w2, b2)


# --------------------------------------------------------------------------
# Kernel 3: token-major combine — gather the (at most 2) expert rows per token
# via DMA, weight, sum, write lane-dense (tile_t, d) blocks.
# --------------------------------------------------------------------------
def _combine_kernel(idx_ref,                                  # SMEM: [2*T] int32
                    w_ref,                                    # (tile_t, 128) f32
                    y_hbm,                                    # HBM: [E*c_pad, d] f32
                    o_ref,                                    # (tile_t, d) f32
                    g1, g2, sem, *, tile_t):
    base = pl.program_id(0) * tile_t

    def _issue(c, carry):
        r1 = idx_ref[2 * (base + c)]
        r2 = idx_ref[2 * (base + c) + 1]
        pltpu.make_async_copy(y_hbm.at[r1], g1.at[c], sem.at[0]).start()
        pltpu.make_async_copy(y_hbm.at[r2], g2.at[c], sem.at[1]).start()
        return carry
    lax.fori_loop(0, tile_t, _issue, 0)

    def _drain(c, carry):
        pltpu.make_async_copy(y_hbm.at[0], g1.at[0], sem.at[0]).wait()
        pltpu.make_async_copy(y_hbm.at[0], g2.at[0], sem.at[1]).wait()
        return carry
    lax.fori_loop(0, tile_t, _drain, 0)

    w = w_ref[...]
    o_ref[...] = w[:, 0:1] * g1[...] + w[:, 1:2] * g2[...]


def combine_outputs(flat_idx, w_pad, y, T, d):
    n_exp, c_pad, _ = y.shape
    y_flat = y.reshape(n_exp * c_pad, d)
    tile_t = _pick_tile_t(T, (512, 256, 128))
    kernel = functools.partial(_combine_kernel, tile_t=tile_t)

    grid_spec = pltpu.PrefetchScalarGridSpec(
        num_scalar_prefetch=1,
        grid=(T // tile_t,),
        in_specs=[
            pl.BlockSpec((tile_t, 128), lambda i, idx: (i, 0)),
            pl.BlockSpec(memory_space=pl.ANY),                        # Y stays in HBM
        ],
        out_specs=pl.BlockSpec((tile_t, d), lambda i, idx: (i, 0)),
        scratch_shapes=[
            pltpu.VMEM((tile_t, d), jnp.float32),
            pltpu.VMEM((tile_t, d), jnp.float32),
            pltpu.SemaphoreType.DMA((2,)),
        ],
    )
    return pl.pallas_call(
        kernel,
        out_shape=jax.ShapeDtypeStruct((T, d), jnp.float32),
        grid_spec=grid_spec,
        compiler_params=pltpu.CompilerParams(
            dimension_semantics=("parallel",)),
    )(flat_idx, w_pad, y_flat)


# --------------------------------------------------------------------------
# Full forward (the computation _ExpertParallel installs on wrapped FFNs)
# --------------------------------------------------------------------------
def expert_parallel_forward(x, params, capacity):
    """x: [B, S, d_model] fp32 -> [B, S, d_model] fp32."""
    B, S, d_model = x.shape
    T = B * S
    n_exp = params["w_gate"].shape[-1]
    # pad the expert buffer (matmul M dim) to an MXU-native multiple; padded
    # slots carry zero combine weight so semantics are unchanged.
    c_pad = _round_up(max(capacity, 1), 128)

    xt = x.reshape(T, d_model).astype(jnp.float32)

    # Kernel 1: fused FP32LinearGate + Top2Router selection.
    # TODO(synk): Gaussian noise sampling and router aux-loss accumulation
    #             (ep_context.add_loss) are stateful/training-only and omitted.
    e1, e2, p1, p2 = gate_and_route(xt, params["w_gate"].astype(jnp.float32))

    tok_table, flat_idx, w_pad = build_dispatch_tables(
        e1, e2, p1, p2, n_exp, capacity, c_pad)

    # TODO(synk): all-to-all across ep_group is an identity on a single device.

    # Kernel 2: DMA-gather dispatch + per-expert FFN -> expert-major Y.
    y = moe_expert_ffn(
        tok_table, xt,
        params["w_front"].astype(jnp.bfloat16),
        params["b_front"].astype(jnp.float32),
        params["w_behind"].astype(jnp.bfloat16),
        params["b_behind"].astype(jnp.float32))

    # Kernel 3: token-major weighted combine (lane-dense stores, no scatter).
    out = combine_outputs(flat_idx, w_pad, y, T, d_model)
    return out.reshape(B, S, d_model)


# --------------------------------------------------------------------------
# pure-JAX reference (dense GShard-style formulation, same precision policy)
# --------------------------------------------------------------------------
def top2_router_dense(logits, capacity):
    T, E = logits.shape
    probs = jax.nn.softmax(logits, axis=-1)
    top1_idx = jnp.argmax(probs, axis=-1)
    mask1 = jax.nn.one_hot(top1_idx, E, dtype=jnp.float32)
    probs_wo1 = probs * (1.0 - mask1)
    top2_idx = jnp.argmax(probs_wo1, axis=-1)
    mask2 = jax.nn.one_hot(top2_idx, E, dtype=jnp.float32)

    loc1 = jnp.cumsum(mask1, axis=0) - 1.0
    loc2 = jnp.cumsum(mask2, axis=0) - 1.0 + jnp.sum(mask1, axis=0, keepdims=True)

    mask1 = mask1 * (loc1 < capacity)
    mask2 = mask2 * (loc2 < capacity)

    pos1 = jnp.sum(loc1 * mask1, axis=-1).astype(jnp.int32)
    pos2 = jnp.sum(loc2 * mask2, axis=-1).astype(jnp.int32)

    w1 = jnp.sum(probs * mask1, axis=-1)
    w2 = jnp.sum(probs * mask2, axis=-1)
    denom = jnp.maximum(w1 + w2, 1e-9)
    w1 = w1 / denom
    w2 = w2 / denom

    cb1 = (w1[:, None, None] * mask1[:, :, None]
           * jax.nn.one_hot(pos1, capacity, dtype=jnp.float32)[:, None, :])
    cb2 = (w2[:, None, None] * mask2[:, :, None]
           * jax.nn.one_hot(pos2, capacity, dtype=jnp.float32)[:, None, :])
    combine_weights = cb1 + cb2
    dispatch_mask = (combine_weights > 0).astype(jnp.float32)
    return combine_weights, dispatch_mask


def reference_forward(x, params, capacity):
    B, S, d = x.shape
    xt = x.reshape(B * S, d).astype(jnp.float32)
    logits = jnp.dot(xt, params["w_gate"], precision="highest")
    combine_w, dispatch_m = top2_router_dense(logits, capacity)
    disp = jnp.einsum("tec,td->ecd", dispatch_m, xt, precision="highest")
    w1 = params["w_front"].astype(jnp.bfloat16)
    w2 = params["w_behind"].astype(jnp.bfloat16)
    h = jnp.einsum("ecd,edf->ecf", disp.astype(jnp.bfloat16), w1,
                   preferred_element_type=jnp.float32) + params["b_front"]
    h = jax.nn.gelu(h)
    eo = jnp.einsum("ecf,efd->ecd", h.astype(jnp.bfloat16), w2,
                    preferred_element_type=jnp.float32) + params["b_behind"]
    out = jnp.einsum("tec,ecd->td", combine_w, eo, precision="highest")
    return out.reshape(B, S, d)


def trunc_normal(key, shape, std):
    # matches nn.init.trunc_normal_(std=std) (a=-2*std, b=2*std)
    return std * jax.random.truncated_normal(key, -2.0, 2.0, shape, jnp.float32)


if __name__ == "__main__":
    # small shapes implied by the module
    B, S, d_model, d_ff = 2, 8, 32, 64
    num_experts, top_k = 4, 2
    capacity_factor_train, min_capacity = 1.25, 4
    T = B * S
    capacity = max(min_capacity,
                   int(math.floor(top_k * capacity_factor_train * T / num_experts)))

    key = jax.random.PRNGKey(0)
    k_x, k_g, k_w1, k_b1, k_w2, k_b2 = jax.random.split(key, 6)

    std_front = math.sqrt(0.1 / d_model)     # std = sqrt(0.1 / in_features)
    std_behind = math.sqrt(0.1 / d_ff)

    params = {
        "w_gate":   trunc_normal(k_g,  (d_model, num_experts), std_front),
        "w_front":  trunc_normal(k_w1, (num_experts, d_model, d_ff), std_front),
        "b_front":  trunc_normal(k_b1, (num_experts, 1, d_ff), std_front),
        "w_behind": trunc_normal(k_w2, (num_experts, d_ff, d_model), std_behind),
        "b_behind": trunc_normal(k_b2, (num_experts, 1, d_model), std_behind),
    }

    x = jax.random.normal(k_x, (B, S, d_model), dtype=jnp.float32)

    out = expert_parallel_forward(x, params, capacity)
    out = jax.block_until_ready(out)

    ref = reference_forward(x, params, capacity)
    assert out.shape == (B, S, d_model)
    assert jnp.allclose(out, ref, atol=2e-3, rtol=2e-3), "mismatch vs reference"

    print("KERNEL_OK")
</pallas_src>

<mosaic_0001>
module attributes {stable_mosaic.version = 11 : i64} {
  func.func @_gate_router_kernel(%arg0: i32, %arg1: memref<16x32xf32, #tpu.memory_space<vmem>>, %arg2: memref<32x4xf32, #tpu.memory_space<vmem>>, %arg3: memref<16x128xf32, #tpu.memory_space<vmem>>) attributes {dimension_semantics = [#tpu.dimension_semantics<parallel>], iteration_bounds = array<i64: 1>, scalar_prefetch = 0 : i64, scratch_operands = 0 : i64, tpu.core_type = #tpu.core_type<tc>, window_params = [{transform_indices = @transform_0, window_bounds = array<i64: 16, 32>}, {pipeline_mode = #tpu.pipeline_mode<synchronous>, transform_indices = @transform_1, window_bounds = array<i64: 32, 4>}, {transform_indices = @transform_2, window_bounds = array<i64: 16, 128>}]} {
    %c0 = arith.constant 0 : index
    %c0_0 = arith.constant 0 : index
    %0 = vector.load %arg1[%c0, %c0_0] : memref<16x32xf32, #tpu.memory_space<vmem>>, vector<16x32xf32>
    %c0_1 = arith.constant 0 : index
    %c0_2 = arith.constant 0 : index
    %1 = vector.load %arg2[%c0_1, %c0_2] : memref<32x4xf32, #tpu.memory_space<vmem>>, vector<32x4xf32>
    %cst = arith.constant dense<0.000000e+00> : vector<16x4xf32>
    %2 = tpu.matmul %0, %1, %cst {dimension_numbers = #tpu.dot_dimension_numbers<[1], [0], [0], [1], [0, 0, 1, 1], [], []>} : vector<16x32xf32>, vector<32x4xf32>, vector<16x4xf32> -> vector<16x4xf32>
    %cst_3 = arith.constant dense<0xFF800000> : vector<16xf32>
    %3 = vector.multi_reduction <maximumf>, %2, %cst_3 [1] : vector<16x4xf32> to vector<16xf32>
    %4 = vector.shape_cast %3 : vector<16xf32> to vector<16x1xf32>
    %5 = vector.broadcast %4 : vector<16x1xf32> to vector<16x4xf32>
    %6 = arith.subf %2, %5 : vector<16x4xf32>
    %7 = math.exp %6 : vector<16x4xf32>
    %cst_4 = arith.constant dense<0.000000e+00> : vector<16xf32>
    %8 = vector.multi_reduction <add>, %7, %cst_4 [1] : vector<16x4xf32> to vector<16xf32>
    %9 = vector.shape_cast %8 : vector<16xf32> to vector<16x1xf32>
    %10 = tpu.iota {dimensions = array<i32: 1>} : vector<16x4xi32>
    %11 = arith.sitofp %10 : vector<16x4xi32> to vector<16x4xf32>
    %cst_5 = arith.constant dense<0xFF800000> : vector<16xf32>
    %12 = vector.multi_reduction <maximumf>, %7, %cst_5 [1] : vector<16x4xf32> to vector<16xf32>
    %13 = vector.shape_cast %12 : vector<16xf32> to vector<16x1xf32>
    %14 = vector.broadcast %13 : vector<16x1xf32> to vector<16x4xf32>
    %15 = arith.cmpf oge, %7, %14 : vector<16x4xf32>
    %cst_6 = arith.constant 4.000000e+00 : f32
    %16 = vector.broadcast %cst_6 : f32 to vector<16x4xf32>
    %17 = arith.select %15, %11, %16 : vector<16x4xi1>, vector<16x4xf32>
    %cst_7 = arith.constant dense<0x7F800000> : vector<16xf32>
    %18 = vector.multi_reduction <minimumf>, %17, %cst_7 [1] : vector<16x4xf32> to vector<16xf32>
    %19 = vector.shape_cast %18 : vector<16xf32> to vector<16x1xf32>
    %20 = arith.divf %13, %9 : vector<16x1xf32>
    %21 = arith.fptosi %19 : vector<16x1xf32> to vector<16x1xi32>
    %22 = vector.broadcast %21 : vector<16x1xi32> to vector<16x4xi32>
    %23 = arith.cmpi eq, %10, %22 : vector<16x4xi32>
    %cst_8 = arith.constant 0.000000e+00 : f32
    %24 = vector.broadcast %cst_8 : f32 to vector<16x4xf32>
    %25 = arith.select %23, %24, %7 : vector<16x4xi1>, vector<16x4xf32>
    %cst_9 = arith.constant dense<0xFF800000> : vector<16xf32>
    %26 = vector.multi_reduction <maximumf>, %25, %cst_9 [1] : vector<16x4xf32> to vector<16xf32>
    %27 = vector.shape_cast %26 : vector<16xf32> to vector<16x1xf32>
    %28 = vector.broadcast %27 : vector<16x1xf32> to vector<16x4xf32>
    %29 = arith.cmpf oge, %25, %28 : vector<16x4xf32>
    %cst_10 = arith.constant 4.000000e+00 : f32
    %30 = vector.broadcast %cst_10 : f32 to vector<16x4xf32>
    %31 = arith.select %29, %11, %30 : vector<16x4xi1>, vector<16x4xf32>
    %cst_11 = arith.constant dense<0x7F800000> : vector<16xf32>
    %32 = vector.multi_reduction <minimumf>, %31, %cst_11 [1] : vector<16x4xf32> to vector<16xf32>
    %33 = vector.shape_cast %32 : vector<16xf32> to vector<16x1xf32>
    %34 = arith.divf %27, %9 : vector<16x1xf32>
    %35 = tpu.iota {dimensions = array<i32: 1>} : vector<16x128xi32>
    %c0_i32 = arith.constant 0 : i32
    %36 = vector.broadcast %c0_i32 : i32 to vector<16x128xi32>
    %37 = arith.cmpi eq, %35, %36 : vector<16x128xi32>
    %cst_12 = arith.constant 0.000000e+00 : f32
    %38 = vector.shape_cast %19 : vector<16x1xf32> to vector<16x1xf32>
    %39 = vector.broadcast %38 : vector<16x1xf32> to vector<16x128xf32>
    %40 = vector.broadcast %cst_12 : f32 to vector<16x128xf32>
    %41 = arith.select %37, %39, %40 : vector<16x128xi1>, vector<16x128xf32>
    %c1_i32 = arith.constant 1 : i32
    %42 = vector.broadcast %c1_i32 : i32 to vector<16x128xi32>
    %43 = arith.cmpi eq, %35, %42 : vector<16x128xi32>
    %cst_13 = arith.constant 0.000000e+00 : f32
    %44 = vector.shape_cast %33 : vector<16x1xf32> to vector<16x1xf32>
    %45 = vector.broadcast %44 : vector<16x1xf32> to vector<16x128xf32>
    %46 = vector.broadcast %cst_13 : f32 to vector<16x128xf32>
    %47 = arith.select %43, %45, %46 : vector<16x128xi1>, vector<16x128xf32>
    %48 = arith.addf %41, %47 : vector<16x128xf32>
    %c2_i32 = arith.constant 2 : i32
    %49 = vector.broadcast %c2_i32 : i32 to vector<16x128xi32>
    %50 = arith.cmpi eq, %35, %49 : vector<16x128xi32>
    %cst_14 = arith.constant 0.000000e+00 : f32
    %51 = vector.shape_cast %20 : vector<16x1xf32> to vector<16x1xf32>
    %52 = vector.broadcast %51 : vector<16x1xf32> to vector<16x128xf32>
    %53 = vector.broadcast %cst_14 : f32 to vector<16x128xf32>
    %54 = arith.select %50, %52, %53 : vector<16x128xi1>, vector<16x128xf32>
    %55 = arith.addf %48, %54 : vector<16x128xf32>
    %c3_i32 = arith.constant 3 : i32
    %56 = vector.broadcast %c3_i32 : i32 to vector<16x128xi32>
    %57 = arith.cmpi eq, %35, %56 : vector<16x128xi32>
    %cst_15 = arith.constant 0.000000e+00 : f32
    %58 = vector.shape_cast %34 : vector<16x1xf32> to vector<16x1xf32>
    %59 = vector.broadcast %58 : vector<16x1xf32> to vector<16x128xf32>
    %60 = vector.broadcast %cst_15 : f32 to vector<16x128xf32>
    %61 = arith.select %57, %59, %60 : vector<16x128xi1>, vector<16x128xf32>
    %62 = arith.addf %55, %61 : vector<16x128xf32>
    %c0_16 = arith.constant 0 : index
    %c0_17 = arith.constant 0 : index
    %63 = vector.load %arg3[%c0_16, %c0_17] : memref<16x128xf32, #tpu.memory_space<vmem>>, vector<16x128xf32>
    tpu.vector_store %arg3[%c0_16, %c0_17], %62 {strides = array<i32>} : memref<16x128xf32, #tpu.memory_space<vmem>>, vector<16x128xf32>,
    return
  }
  func.func @transform_0(%arg0: i32) -> (i32, i32) {
    %c0_i32 = arith.constant 0 : i32
    %c0_i32_0 = arith.constant 0 : i32
    return %arg0, %c0_i32 : i32, i32
  }
  func.func @transform_1(%arg0: i32) -> (i32, i32) {
    %c0_i32 = arith.constant 0 : i32
    %c0_i32_0 = arith.constant 0 : i32
    %c0_i32_1 = arith.constant 0 : i32
    return %c0_i32, %c0_i32_0 : i32, i32
  }
  func.func @transform_2(%arg0: i32) -> (i32, i32) {
    %c0_i32 = arith.constant 0 : i32
    %c0_i32_0 = arith.constant 0 : i32
    return %arg0, %c0_i32 : i32, i32
  }
}

</mosaic_0001>

<llo_original>
// kernel: tpu_custom_call.1
$region0: #{tpu_custom_call.1}
  #allocation0 [shape = 'u32[]', space=smem, size = 0x4, offset = 0x4, fixed_abs, tag = 'smem constant byte address 0x4 - core index']
  #allocation1 [shape = 'u32[144,128]{1,0:T(1,128)}', space=vmem, size = 0x12000, scoped, tag = 'internal scratch']
  %s0 = inlined_call_operand.vmem [shape: f32[16,32], index: 0, kind: input, shape index: {}]
  %s1 = inlined_call_operand.vmem [shape: f32[32,4], index: 1, kind: input, shape index: {}]
  %s2 = inlined_call_operand.hbm [shape: f32[16,128], index: 2, kind: output, shape index: {}]
  %s3 = sld [smem:[#allocation0]]
  $region18: #{tpu_custom_call.1} parent=0
    _
  %s5 = ssub.s32 1, %s3
  %s6 = scalar_select 0, %s5, %s3
  $region1: #{tpu_custom_call.1} parent=0
    #allocation2 [shape = 'u8[8192]{0}', space=vmem, size = 0x2000, scoped, tag = 'output window, operand 0, single buffered']
    #allocation3 [shape = 's32[1]{0}', space=sflag, size = 0x4, scoped, tag = 'scoped memory for tpu_custom_call.1']
    %7 = vsyncpa [#allocation3], 0
    // Predicated region
    $region2: #{tpu_custom_call.1} parent=1 // pred_check
      _
    $region3: #{tpu_custom_call.1} parent=1 // pred_check_branch
      %9 = sbr.rel (0) target = $region5
    $region4: #{tpu_custom_call.1} parent=1 // pred_region
      _
    $region5: #{tpu_custom_call.1} parent=1 // pred_fallthru
      _
    // Predicated region
    $region6: #{tpu_custom_call.1} parent=1 // pred_check
      _
    $region7: #{tpu_custom_call.1} parent=1 // pred_check_branch
      %11 = sbr.rel (0) target = $region9
    $region8: #{tpu_custom_call.1} parent=1 // pred_region
      _
    $region9: #{tpu_custom_call.1} parent=1 // pred_fallthru
      _
    %v12 = vld [vmem:[%s0] sm:$0xff]
    %v13 = vld [vmem:[%s0 + $0x8] sm:$0xff]
    %v14 = vld [vmem:[%s1] sm:$0xff]
    %v15 = vld [vmem:[%s1 + $0x8] sm:$0xff]
    %v16 = vld [vmem:[%s1 + $0x10] sm:$0xff]
    %v17 = vld [vmem:[%s1 + $0x18] sm:$0xff]
    %vm18 = vcmask 261120
    %v20 = vsel %vm18, %v12, 0
    %v23 = vsel %vm18, %v13, 0
    %25 = vmatprep.subr.mxu0 0.0
    %26 = vmatpush1.msra.mxu0 %v14
    %27 = vmatprep.subr.mxu0 0.0
    %28 = vmatpush1.msra.mxu0 %v15
    %29 = vmatprep.subr.mxu0 0.0
    %30 = vmatpush1.msra.mxu0 %v16
    %31 = vmatprep.subr.mxu0 0.0
    %32 = vmatpush1.msra.mxu0 %v17
    %33 = vmatprep.subr.mxu0 0.0
    %34 = vmatpush1.msra.mxu0 0.0
    %35 = vmatprep.subr.mxu0 0.0
    %36 = vmatpush1.msra.mxu0 0.0
    %37 = vmatprep.subr.mxu0 0.0
    %38 = vmatpush1.msra.mxu0 0.0
    %39 = vmatprep.subr.mxu0 0.0
    %40 = vmatpush1.msra.mxu0 0.0
    %41 = vmatprep.subr.mxu0 0.0
    %42 = vmatpush1.msra.mxu0 0.0
    %43 = vmatprep.subr.mxu0 0.0
    %44 = vmatpush1.msra.mxu0 0.0
    %45 = vmatprep.subr.mxu0 0.0
    %46 = vmatpush1.msra.mxu0 0.0
    %47 = vmatprep.subr.mxu0 0.0
    %48 = vmatpush1.msra.mxu0 0.0
    %49 = vmatprep.subr.mxu0 0.0
    %50 = vmatpush1.msra.mxu0 0.0
    %51 = vmatprep.subr.mxu0 0.0
    %52 = vmatpush1.msra.mxu0 0.0
    %53 = vmatprep.subr.mxu0 0.0
    %54 = vmatpush1.msra.mxu0 0.0
    %55 = vmatprep.subr.mxu0 0.0
    %56 = vmatpush1.msra.mxu0 0.0
    %57 = vmatprep.subr.mxu0 0.0
    %58 = vmatpush1.msra.mxu0 0.0
    %59 = vmatprep.subr.mxu0 0.0
    %60 = vmatpush1.msra.mxu0 0.0
    %61 = vmatprep.subr.mxu0 0.0
    %62 = vmatpush1.msra.mxu0 0.0
    %63 = vmatprep.subr.mxu0 0.0
    %64 = vmatpush1.msra.mxu0 0.0
    %65 = vmatprep.subr.mxu0 0.0
    %66 = vmatpush1.msra.mxu0 0.0
    %67 = vmatprep.subr.mxu0 0.0
    %68 = vmatpush1.msra.mxu0 0.0
    %69 = vmatprep.subr.mxu0 0.0
    %70 = vmatpush1.msra.mxu0 0.0
    %71 = vmatprep.subr.mxu0 0.0
    %72 = vmatpush1.msra.mxu0 0.0
    %73 = vmatprep.subr.mxu0 0.0
    %74 = vmatpush1.msra.mxu0 0.0
    %75 = vmatprep.subr.mxu0 0.0
    %76 = vmatpush1.msra.mxu0 0.0
    %77 = vmatprep.subr.mxu0 0.0
    %78 = vmatpush1.msra.mxu0 0.0
    %79 = vmatprep.subr.mxu0 0.0
    %80 = vmatpush1.msra.mxu0 0.0
    %81 = vmatprep.subr.mxu0 0.0
    %82 = vmatpush1.msra.mxu0 0.0
    %83 = vmatprep.subr.mxu0 0.0
    %84 = vmatpush1.msra.mxu0 0.0
    %85 = vmatprep.subr.mxu0 0.0
    %86 = vmatpush1.msra.mxu0 0.0
    %87 = vmatprep.subr.mxu0 0.0
    %88 = vmatpush1.msra.mxu0 0.0
    %89 = vmatprep.mubr.f32.mxu0 0.0
    %90 = vmatmul.mubr.f32.gmra.mrb[0].mxu0 %v20
    %v91 = vpop.f32.mrb[0].mxu0
    %v92 = vadd.f32 0.0, %v91
    %v93 = vpop.f32.mrb[0].mxu0
    %94 = vmatprep.mubr.f32.mxu0 0.0
    %95 = vmatmul.mubr.f32.gmra.mrb[0].mxu0 %v23
    %v96 = vpop.f32.mrb[0].mxu0
    %v97 = vadd.f32 0.0, %v96
    %v98 = vpop.f32.mrb[0].mxu0
    %99 = vdwg.mxu0
    %vm100 = vcmask 31744
    %v101 = vsel %vm100, %v92, -inf
    %102 = vmax.xlane.f32.xlu0 %v101
    %v103 = vpop.xlane.xlu0 %102
    %v104 = vsel %vm100, %v97, -inf
    %105 = vmax.xlane.f32.xlu0 %v104
    %v106 = vpop.xlane.xlu0 %105
    %v107 = vsub.f32 %v92, %v103
    %v108 = vsub.f32 %v97, %v106
    %v109 = vmul.f32 %v107, 1.442695
    %v110 = vpow.pop %v109
    %v111 = vmul.f32 %v108, 1.442695
    %v112 = vpow.pop %v111
    %v113 = vsel %vm100, %v110, 0.0
    %114 = vadd.xlane.f32.xlu0 %v113
    %v115 = vpop.xlane.xlu0 %114
    %v116 = vsel %vm100, %v112, 0.0
    %117 = vadd.xlane.f32.xlu0 %v116
    %v118 = vpop.xlane.xlu0 %117
    %v119 = vlaneseq
    %v120 = vand.u32 %v119, 127
    %v121 = vcvt.s32.f32 %v120
    %v122 = vsel %vm100, %v110, -inf
    %123 = vmax.xlane.f32.xlu0 %v122
    %v124 = vpop.xlane.xlu0 %123
    %v125 = vsel %vm100, %v112, -inf
    %126 = vmax.xlane.f32.xlu0 %v125
    %v127 = vpop.xlane.xlu0 %126
    %vm128 = vcmp.ge.f32.partialorder %v110, %v124
    %vm129 = vcmp.ge.f32.partialorder %v112, %v127
    %v130 = vsel %vm128, %v121, 4.0
    %v131 = vsel %vm129, %v121, 4.0
    %v132 = vsel %vm100, %v130, inf
    %133 = vmin.xlane.f32.xlu0 %v132
    %v134 = vpop.xlane.xlu0 %133
    %v135 = vsel %vm100, %v131, inf
    %136 = vmin.xlane.f32.xlu0 %v135
    %v137 = vpop.xlane.xlu0 %136
    %v138 = vrcp.pop %v115
    %v139 = vmul.f32 %v124, %v138
    %v140 = vrcp.pop %v118
    %v141 = vmul.f32 %v127, %v140
    %v142 = vcvt.f32.s32.to.zero.pseudo %v134
    %v143 = vcvt.f32.s32.to.zero.pseudo %v137
    %vm144 = vcmp.eq.s32.totalorder %v120, %v142
    %vm145 = vcmp.eq.s32.totalorder %v120, %v143
    %v146 = vsel %vm144, 0.0, %v110
    %v147 = vsel %vm145, 0.0, %v112
    %v148 = vsel %vm100, %v146, -inf
    %149 = vmax.xlane.f32.xlu0 %v148
    %v150 = vpop.xlane.xlu0 %149
    %v151 = vsel %vm100, %v147, -inf
    %152 = vmax.xlane.f32.xlu0 %v151
    %v153 = vpop.xlane.xlu0 %152
    %vm154 = vcmp.ge.f32.partialorder %v146, %v150
    %vm155 = vcmp.ge.f32.partialorder %v147, %v153
    %v156 = vsel %vm154, %v121, 4.0
    %v157 = vsel %vm155, %v121, 4.0
    %v158 = vsel %vm100, %v156, inf
    %159 = vmin.xlane.f32.xlu0 %v158
    %v160 = vpop.xlane.xlu0 %159
    %v161 = vsel %vm100, %v157, inf
    %162 = vmin.xlane.f32.xlu0 %v161
    %v163 = vpop.xlane.xlu0 %162
    %v164 = vmul.f32 %v150, %v138
    %v165 = vmul.f32 %v153, %v140
    %vm166 = vcmp.eq.s32.totalorder %v120, 0
    %v167 = vsel %vm166, %v134, 0.0
    %v168 = vsel %vm166, %v137, 0.0
    %vm169 = vcmp.eq.s32.totalorder %v120, 1
    %v170 = vsel %vm169, %v160, 0.0
    %v171 = vsel %vm169, %v163, 0.0
    %v172 = vadd.f32 %v167, %v170
    %v173 = vadd.f32 %v168, %v171
    %vm174 = vcmp.eq.s32.totalorder %v120, 2
    %v175 = vsel %vm174, %v139, 0.0
    %v176 = vsel %vm174, %v141, 0.0
    %v177 = vadd.f32 %v172, %v175
    %v178 = vadd.f32 %v173, %v176
    %vm179 = vcmp.eq.s32.totalorder %v120, 3
    %v180 = vsel %vm179, %v164, 0.0
    %v181 = vsel %vm179, %v165, 0.0
    %v182 = vadd.f32 %v177, %v180
    %v183 = vadd.f32 %v178, %v181
    %184 = vst [vmem:[#allocation2] sm:$0xff] %v182
    %185 = vst [vmem:[#allocation2 + $0x8] sm:$0xff] %v183
    // Predicated region
    $region10: #{tpu_custom_call.1} parent=1 // pred_check
      _
    $region11: #{tpu_custom_call.1} parent=1 // pred_check_branch
      %187 = sbr.rel (0) target = $region13
    $region12: #{tpu_custom_call.1} parent=1 // pred_region
      %s189 = ssub.s32 256, 256
      %190 = vsyncadd [#allocation3], %s189
      %s191 = sshll.u32 [#allocation2], 4
      %s192 = int_to_ptr.vmem [resolvable:$true] %s191
      %197 = dma.vmem_to_hbm [thread:$0]  %s192, 256, %s2, [#allocation3], 128, 128, 8
    $region13: #{tpu_custom_call.1} parent=1 // pred_fallthru
      _
    // Predicated region
    $region14: #{tpu_custom_call.1} parent=1 // pred_check
      _
    $region15: #{tpu_custom_call.1} parent=1 // pred_check_branch
      %199 = sbr.rel (0) target = $region17
    $region16: #{tpu_custom_call.1} parent=1 // pred_region
      %200 = dma.done [#allocation3], 256
    $region17: #{tpu_custom_call.1} parent=1 // pred_fallthru
      _
    %201 = vsyncpa [#allocation3], 1

</llo_original>
